<compile_context>
chip_gen: v7x
topology: tpu7x:2x2x1
jax: 0.10.0
libtpu: 0.0.40
codegen_flags: <defaults>
</compile_context>

<pallas_src>
import math

import jax
import jax.numpy as jnp
from jax.experimental import pallas as pl
from jax.experimental.pallas import tpu as pltpu


def _fold_to_vreg_tile(x, sub=8, lane=128):
    """Reduce an (R, L) f32 array to an (sub, lane) tile.

    Uses only vreg-aligned static slices + VPU adds (runs once per core, in
    the cold last grid step).
    """
    R, L = x.shape
    acc = x[:, 0:lane]
    for j in range(1, L // lane):
        acc = acc + x[:, j * lane:(j + 1) * lane]
    out = acc[0:sub, :]
    for j in range(1, R // sub):
        out = out + acc[j * sub:(j + 1) * sub, :]
    return out


def _sse_kernel(out_ref, tgt_ref, part_ref, acc_ref):
    """Streaming sum-of-squared-errors.

    grid = (num_cores, tiles_per_core); axis 0 is 'parallel' (megacore split),
    axis 1 is the serial streaming loop.  acc_ref is a full-tile f32 VMEM
    accumulator; part_ref is this core's (1, 8, 128) partial-sum output.
    """
    i = pl.program_id(1)

    @pl.when(i == 0)
    def _():
        acc_ref[...] = jnp.zeros_like(acc_ref)

    d = out_ref[...].astype(jnp.float32) - tgt_ref[...].astype(jnp.float32)
    acc_ref[...] += d * d

    @pl.when(i == pl.num_programs(1) - 1)
    def _():
        part_ref[0] = _fold_to_vreg_tile(acc_ref[...])


def _choose_tiling(total, max_cores=2):
    """Pick (lane, tile_rows, num_cores, tiles_per_core, rows_padded)."""
    # Lane-dense last dim: 1024 for real workloads, 128 for tiny tensors.
    lane = 1024 if total >= 8 * 1024 else 128
    rows = -(-total // lane)
    # ~2 MiB per f32 input tile at lane=1024; shrink for small inputs.
    tr = 512
    while tr > 8 and tr > rows:
        tr //= 2                      # stays a multiple of 8
    n_tiles = -(-rows // tr)
    nc = max_cores if n_tiles >= max_cores else 1
    tiles_per_core = -(-n_tiles // nc)
    rows_padded = nc * tiles_per_core * tr
    return lane, tr, nc, tiles_per_core, rows_padded


def plain_loss(output, target, mean, logvar, kld_weight=0.01):
    assert output.shape == target.shape
    total = int(math.prod(output.shape))

    lane, tr, nc, tiles_per_core, rows_padded = _choose_tiling(total)
    padded_total = rows_padded * lane

    flat_o = output.reshape(-1)
    flat_t = target.reshape(-1)
    pad = padded_total - total
    if pad:
        # zero-padding both operands contributes 0 to the SSE
        flat_o = jnp.pad(flat_o, (0, pad))
        flat_t = jnp.pad(flat_t, (0, pad))
    out2d = flat_o.reshape(rows_padded, lane)
    tgt2d = flat_t.reshape(rows_padded, lane)

    data_map = lambda c, i: (c * tiles_per_core + i, 0)

    sse_parts = pl.pallas_call(
        _sse_kernel,
        out_shape=jax.ShapeDtypeStruct((nc, 8, 128), jnp.float32),
        grid_spec=pltpu.PrefetchScalarGridSpec(
            num_scalar_prefetch=0,
            grid=(nc, tiles_per_core),
            in_specs=[
                pl.BlockSpec((tr, lane), data_map),     # output tile
                pl.BlockSpec((tr, lane), data_map),     # target tile
            ],
            out_specs=pl.BlockSpec((1, 8, 128), lambda c, i: (c, 0, 0)),
            scratch_shapes=[pltpu.VMEM((tr, lane), jnp.float32)],
        ),
        compiler_params=pltpu.CompilerParams(
            dimension_semantics=("parallel", "arbitrary"),
            vmem_limit_bytes=32 * 1024 * 1024,
        ),
    )(out2d, tgt2d)

    content = jnp.sum(sse_parts) / jnp.float32(total)

    # KLD term is tiny (B x Z elements); computed in plain JAX per perf review.
    mu = mean.astype(jnp.float32)
    lv = logvar.astype(jnp.float32)
    kld = -0.5 * jnp.mean(1.0 + lv - mu * mu - jnp.exp(lv))

    return jnp.float32(kld_weight) * kld + content


def plain_loss_ref(output, target, mean, logvar, kld_weight=0.01):
    kld = -0.5 * jnp.mean(1.0 + logvar - mean ** 2 - jnp.exp(logvar))
    content = jnp.mean((output - target) ** 2)
    return kld_weight * kld + content


if __name__ == "__main__":
    key = jax.random.PRNGKey(0)
    k1, k2, k3, k4 = jax.random.split(key, 4)

    B, C, H, W = 2, 4, 16, 16     # output/target (NCHW)
    Z = 32                        # latent dim for mean/logvar

    output = jax.random.normal(k1, (B, C, H, W), dtype=jnp.float32)
    target = jax.random.normal(k2, (B, C, H, W), dtype=jnp.float32)
    mean = jax.random.normal(k3, (B, Z), dtype=jnp.float32)
    logvar = 0.1 * jax.random.normal(k4, (B, Z), dtype=jnp.float32)

    loss = plain_loss(output, target, mean, logvar, kld_weight=0.01)
    loss = jax.block_until_ready(loss)

    ref = plain_loss_ref(output, target, mean, logvar, kld_weight=0.01)
    assert jnp.allclose(loss, ref, rtol=1e-5, atol=1e-6), (loss, ref)

    print("KERNEL_OK")
</pallas_src>

<mosaic_0001>
module attributes {stable_mosaic.version = 11 : i64} {
  func.func @_sse_kernel(%arg0: i32, %arg1: i32, %arg2: memref<16x128xf32, #tpu.memory_space<vmem>>, %arg3: memref<16x128xf32, #tpu.memory_space<vmem>>, %arg4: memref<1x8x128xf32, #tpu.memory_space<vmem>>, %arg5: memref<16x128xf32, #tpu.memory_space<vmem>>) attributes {dimension_semantics = [#tpu.dimension_semantics<parallel>, #tpu.dimension_semantics<arbitrary>], iteration_bounds = array<i64: 1, 1>, scalar_prefetch = 0 : i64, scratch_operands = 1 : i64, tpu.core_type = #tpu.core_type<tc>, window_params = [{transform_indices = @transform_0, window_bounds = array<i64: 16, 128>}, {transform_indices = @transform_1, window_bounds = array<i64: 16, 128>}, {transform_indices = @transform_2, window_bounds = array<i64: 1, 8, 128>}]} {
    %c0_i32 = arith.constant 0 : i32
    %0 = arith.cmpi eq, %arg1, %c0_i32 : i32
    %1 = arith.extui %0 : i1 to i32
    %c0_i32_0 = arith.constant 0 : i32
    %2 = arith.cmpi ne, %1, %c0_i32_0 : i32
    scf.if %2 {
      %cst = arith.constant 0.000000e+00 : f32
      %13 = vector.broadcast %cst : f32 to vector<16x128xf32>
      %c0_10 = arith.constant 0 : index
      %c0_11 = arith.constant 0 : index
      %14 = vector.load %arg5[%c0_10, %c0_11] : memref<16x128xf32, #tpu.memory_space<vmem>>, vector<16x128xf32>
      tpu.vector_store %arg5[%c0_10, %c0_11], %13 {strides = array<i32>} : memref<16x128xf32, #tpu.memory_space<vmem>>, vector<16x128xf32>,
    } else {
    }
    %c0 = arith.constant 0 : index
    %c0_1 = arith.constant 0 : index
    %3 = vector.load %arg2[%c0, %c0_1] : memref<16x128xf32, #tpu.memory_space<vmem>>, vector<16x128xf32>
    %c0_2 = arith.constant 0 : index
    %c0_3 = arith.constant 0 : index
    %4 = vector.load %arg3[%c0_2, %c0_3] : memref<16x128xf32, #tpu.memory_space<vmem>>, vector<16x128xf32>
    %5 = arith.subf %3, %4 : vector<16x128xf32>
    %c0_4 = arith.constant 0 : index
    %c0_5 = arith.constant 0 : index
    %6 = vector.load %arg5[%c0_4, %c0_5] : memref<16x128xf32, #tpu.memory_space<vmem>>, vector<16x128xf32>
    %7 = arith.mulf %5, %5 : vector<16x128xf32>
    %8 = arith.addf %6, %7 : vector<16x128xf32>
    %c0_6 = arith.constant 0 : index
    %c0_7 = arith.constant 0 : index
    %9 = vector.load %arg5[%c0_6, %c0_7] : memref<16x128xf32, #tpu.memory_space<vmem>>, vector<16x128xf32>
    tpu.vector_store %arg5[%c0_6, %c0_7], %8 {strides = array<i32>} : memref<16x128xf32, #tpu.memory_space<vmem>>, vector<16x128xf32>,
    %c0_i32_8 = arith.constant 0 : i32
    %10 = arith.cmpi eq, %arg1, %c0_i32_8 : i32
    %11 = arith.extui %10 : i1 to i32
    %c0_i32_9 = arith.constant 0 : i32
    %12 = arith.cmpi ne, %11, %c0_i32_9 : i32
    scf.if %12 {
      %c0_10 = arith.constant 0 : index
      %c0_11 = arith.constant 0 : index
      %13 = vector.load %arg5[%c0_10, %c0_11] : memref<16x128xf32, #tpu.memory_space<vmem>>, vector<16x128xf32>
      %14 = vector.extract_strided_slice %13 {offsets = [0, 0], sizes = [8, 128], strides = [1, 1]} : vector<16x128xf32> to vector<8x128xf32>
      %15 = vector.extract_strided_slice %13 {offsets = [8, 0], sizes = [8, 128], strides = [1, 1]} : vector<16x128xf32> to vector<8x128xf32>
      %16 = arith.addf %14, %15 : vector<8x128xf32>
      %c0_12 = arith.constant 0 : index
      %c0_13 = arith.constant 0 : index
      %c0_14 = arith.constant 0 : index
      %17 = vector.load %arg4[%c0_12, %c0_13, %c0_14] : memref<1x8x128xf32, #tpu.memory_space<vmem>>, vector<1x8x128xf32>
      %18 = vector.shape_cast %17 : vector<1x8x128xf32> to vector<8x128xf32>
      %19 = vector.shape_cast %16 : vector<8x128xf32> to vector<1x8x128xf32>
      tpu.vector_store %arg4[%c0_12, %c0_13, %c0_14], %19 {strides = array<i32>} : memref<1x8x128xf32, #tpu.memory_space<vmem>>, vector<1x8x128xf32>,
    } else {
    }
    return
  }
  func.func @transform_0(%arg0: i32, %arg1: i32) -> (i32, i32) {
    %c1_i32 = arith.constant 1 : i32
    %0 = arith.muli %arg0, %c1_i32 : i32
    %1 = arith.addi %0, %arg1 : i32
    %c0_i32 = arith.constant 0 : i32
    %c0_i32_0 = arith.constant 0 : i32
    return %1, %c0_i32 : i32, i32
  }
  func.func @transform_1(%arg0: i32, %arg1: i32) -> (i32, i32) {
    %c1_i32 = arith.constant 1 : i32
    %0 = arith.muli %arg0, %c1_i32 : i32
    %1 = arith.addi %0, %arg1 : i32
    %c0_i32 = arith.constant 0 : i32
    %c0_i32_0 = arith.constant 0 : i32
    return %1, %c0_i32 : i32, i32
  }
  func.func @transform_2(%arg0: i32, %arg1: i32) -> (i32, i32, i32) {
    %c0_i32 = arith.constant 0 : i32
    %c0_i32_0 = arith.constant 0 : i32
    %c0_i32_1 = arith.constant 0 : i32
    return %arg0, %c0_i32, %c0_i32_0 : i32, i32, i32
  }
}

</mosaic_0001>

<llo_original>
// kernel: tpu_custom_call.1
$region0: #{tpu_custom_call.1}
  #allocation0 [shape = 'u32[]', space=smem, size = 0x4, offset = 0x4, fixed_abs, tag = 'smem constant byte address 0x4 - core index']
  #allocation1 [shape = 'u32[144,128]{1,0:T(1,128)}', space=vmem, size = 0x12000, scoped, tag = 'internal scratch']
  #allocation2 [shape = 'f32[16,128]{1,0:T(8,128)}', space=vmem, size = 0x2000, scoped, tag = 'scratch operand']
  %s0 = inlined_call_operand.hbm [shape: f32[16,128], index: 0, kind: input, shape index: {}]
  %s1 = inlined_call_operand.hbm [shape: f32[16,128], index: 1, kind: input, shape index: {}]
  %s2 = inlined_call_operand.hbm [shape: f32[1,8,128], index: 2, kind: output, shape index: {}]
  %s3 = sld [smem:[#allocation0]]
  $region34: #{tpu_custom_call.1} parent=0
    _
  %s5 = ssub.s32 1, %s3
  %s6 = scalar_select 0, %s5, %s3
  $region1: #{tpu_custom_call.1} parent=0
    #allocation3 [shape = 'u8[8192]{0}', space=vmem, size = 0x2000, scoped, tag = 'input window, operand 0, single buffered']
    #allocation4 [shape = 's32[1]{0}', space=sflag, size = 0x4, scoped, tag = 'scoped memory for tpu_custom_call.1']
    #allocation5 [shape = 's32[1]{0}', space=sflag, size = 0x4, scoped, tag = 'scoped memory for tpu_custom_call.1']
    #allocation6 [shape = 'u8[8192]{0}', space=vmem, size = 0x2000, scoped, tag = 'input window, operand 1, single buffered']
    #allocation7 [shape = 's32[1]{0}', space=sflag, size = 0x4, scoped, tag = 'scoped memory for tpu_custom_call.1']
    #allocation8 [shape = 'u8[4096]{0}', space=vmem, size = 0x1000, scoped, tag = 'output window, operand 0, single buffered']
    %7 = vsyncpa [#allocation4], 0
    %8 = vsyncpa [#allocation7], 0
    %9 = vsyncpa [#allocation5], 0
    // Predicated region
    $region2: #{tpu_custom_call.1} parent=1 // pred_check
      _
    $region3: #{tpu_custom_call.1} parent=1 // pred_check_branch
      %11 = sbr.rel (0) target = $region5
    $region4: #{tpu_custom_call.1} parent=1 // pred_region
      %s12 = sadd.s32 0, 0
      %s13 = smul.u32 2, %s12
      %s15 = ssub.s32 256, 256
      %16 = vsyncadd [#allocation4], %s15
      %s17 = smul.addr %s13, 128
      %s18 = scalar_lea.hbm %s0, %s17
      %s19 = sshll.u32 [#allocation3], 4
      %s20 = int_to_ptr.vmem [resolvable:$true] %s19
      %25 = dma.hbm_to_vmem [thread:$0]  %s18, 256, %s20, [#allocation4], 128, 128, 8
    $region5: #{tpu_custom_call.1} parent=1 // pred_fallthru
      _
    // Predicated region
    $region6: #{tpu_custom_call.1} parent=1 // pred_check
      _
    $region7: #{tpu_custom_call.1} parent=1 // pred_check_branch
      %27 = sbr.rel (0) target = $region9
    $region8: #{tpu_custom_call.1} parent=1 // pred_region
      %s28 = sadd.s32 0, 0
      %s29 = smul.u32 2, %s28
      %s31 = ssub.s32 256, 256
      %32 = vsyncadd [#allocation7], %s31
      %s33 = smul.addr %s29, 128
      %s34 = scalar_lea.hbm %s1, %s33
      %s35 = sshll.u32 [#allocation6], 4
      %s36 = int_to_ptr.vmem [resolvable:$true] %s35
      %41 = dma.hbm_to_vmem [thread:$0]  %s34, 256, %s36, [#allocation7], 128, 128, 8
    $region9: #{tpu_custom_call.1} parent=1 // pred_fallthru
      _
    // Predicated region
    $region10: #{tpu_custom_call.1} parent=1 // pred_check
      _
    $region11: #{tpu_custom_call.1} parent=1 // pred_check_branch
      %43 = sbr.rel (0) target = $region13
    $region12: #{tpu_custom_call.1} parent=1 // pred_region
      %44 = dma.done [#allocation4], 256
    $region13: #{tpu_custom_call.1} parent=1 // pred_fallthru
      _
    // Predicated region
    $region14: #{tpu_custom_call.1} parent=1 // pred_check
      _
    $region15: #{tpu_custom_call.1} parent=1 // pred_check_branch
      %46 = sbr.rel (0) target = $region17
    $region16: #{tpu_custom_call.1} parent=1 // pred_region
      %47 = dma.done [#allocation7], 256
    $region17: #{tpu_custom_call.1} parent=1 // pred_fallthru
      _
    %s48 = sadd.s32 0, 0
    %s49 = smul.u32 2, %s48
    %s50 = sadd.s32 0, 0
    %s51 = smul.u32 2, %s50
    %p52 = scmp.eq.s32.totalorder 0, 0
    // Predicated region
    $region18: #{tpu_custom_call.1} parent=1 // pred_check
      %p53 = pneg %p52
    $region19: #{tpu_custom_call.1} parent=1 // pred_check_branch
      %55 = sbr.rel (%p53) target = $region21
    $region20: #{tpu_custom_call.1} parent=1 // pred_region
      %56 = vst [vmem:[#allocation2] sm:$0xff] 0.0
      %57 = vst [vmem:[#allocation2 + $0x8] sm:$0xff] 0.0
    $region21: #{tpu_custom_call.1} parent=1 // pred_fallthru
      _
    %v58 = vld [vmem:[#allocation3] sm:$0xff]
    %v59 = vld [vmem:[#allocation3 + $0x8] sm:$0xff]
    %v60 = vld [vmem:[#allocation6] sm:$0xff]
    %v61 = vld [vmem:[#allocation6 + $0x8] sm:$0xff]
    %v62 = vsub.f32 %v58, %v60
    %v63 = vsub.f32 %v59, %v61
    %v64 = vld [vmem:[#allocation2] sm:$0xff]
    %v65 = vld [vmem:[#allocation2 + $0x8] sm:$0xff]
    %v66 = vmul.f32 %v62, %v62
    %v67 = vmul.f32 %v63, %v63
    %v68 = vadd.f32 %v64, %v66
    %v69 = vadd.f32 %v65, %v67
    %70 = vst [vmem:[#allocation2] sm:$0xff] %v68
    %71 = vst [vmem:[#allocation2 + $0x8] sm:$0xff] %v69
    // Predicated region
    $region22: #{tpu_custom_call.1} parent=1 // pred_check
      %p72 = pneg %p52
    $region23: #{tpu_custom_call.1} parent=1 // pred_check_branch
      %74 = sbr.rel (%p72) target = $region25
    $region24: #{tpu_custom_call.1} parent=1 // pred_region
      %v75 = vld [vmem:[#allocation2] sm:$0xff]
      %v76 = vld [vmem:[#allocation2 + $0x8] sm:$0xff]
      %v77 = vadd.f32 %v75, %v76
      %78 = vst [vmem:[#allocation8] sm:$0xff] %v77
    $region25: #{tpu_custom_call.1} parent=1 // pred_fallthru
      _
    // Predicated region
    $region26: #{tpu_custom_call.1} parent=1 // pred_check
      _
    $region27: #{tpu_custom_call.1} parent=1 // pred_check_branch
      %80 = sbr.rel (0) target = $region29
    $region28: #{tpu_custom_call.1} parent=1 // pred_region
      %s82 = ssub.s32 128, 128
      %83 = vsyncadd [#allocation5], %s82
      %s85 = sshll.u32 [#allocation8], 4
      %s86 = int_to_ptr.vmem [resolvable:$true] %s85
      %88 = dma.vmem_to_hbm [thread:$0]  %s86, 128, %s2, [#allocation5]
    $region29: #{tpu_custom_call.1} parent=1 // pred_fallthru
      _
    // Predicated region
    $region30: #{tpu_custom_call.1} parent=1 // pred_check
      _
    $region31: #{tpu_custom_call.1} parent=1 // pred_check_branch
      %90 = sbr.rel (0) target = $region33
    $region32: #{tpu_custom_call.1} parent=1 // pred_region
      %91 = dma.done [#allocation5], 128
    $region33: #{tpu_custom_call.1} parent=1 // pred_fallthru
      _
    %92 = vsyncpa [#allocation4], 1
    %93 = vsyncpa [#allocation7], 1
    %94 = vsyncpa [#allocation5], 1

</llo_original>
